<compile_context>
chip_gen: v7x
topology: tpu7x:2x2x1
jax: 0.10.0
libtpu: 0.0.40
codegen_flags: <defaults>
</compile_context>

<pallas_src>
import functools

import jax
import jax.numpy as jnp
from jax.experimental import pallas as pl
from jax.experimental.pallas import tpu as pltpu


# ----------------------------------------------------------------------------
# Fused kernel: one conv matmul (+bias+ReLU+mask+max-pool) for both branches,
# one hidden matmul (+tanh), one fc matmul.  Everything 128-lane padded.
# ----------------------------------------------------------------------------
def fused_cnn3_kernel(x_ref, wconv_ref, bconv_ref, vlen_ref,
                      whid_ref, bhid_ref, wfc_ref, bfc_ref, o_ref):
    B, L, K = x_ref.shape            # (B, L, T*(D0+D1))
    NP = o_ref.shape[-1]             # lane-padded channel width (128)

    # --- conv for BOTH embeddings, ALL filter sizes, ALL taps: one MXU push.
    x2d = x_ref[...].reshape(B * L, K)                       # merge leading dims
    y = jnp.dot(x2d, wconv_ref[...],
                preferred_element_type=jnp.float32)          # (B*L, 128)
    y = jnp.maximum(y + bconv_ref[...], 0.0)                 # bias + ReLU
    y = y.reshape(B, L, NP)

    # --- mask window positions past each channel's valid conv length
    #     (t_out = L - filter + 1, per column), then max-over-time.
    #     ReLU output >= 0 so masking with 0.0 is exact.
    tpos = jax.lax.broadcasted_iota(jnp.int32, (B, L, NP), 1)
    y = jnp.where(tpos < vlen_ref[...], y, 0.0)
    pooled = jnp.max(y, axis=1)                              # (B, 128)

    # --- hidden + hidden_cv as ONE block-diagonal matmul, then tanh.
    h = jnp.tanh(jnp.dot(pooled, whid_ref[...],
                         preferred_element_type=jnp.float32) + bhid_ref[...])

    # --- final fc over cat(h, hcv): single matmul on the lane-packed h.
    o_ref[...] = jnp.dot(h, wfc_ref[...],
                         preferred_element_type=jnp.float32) + bfc_ref[...]


def cnn3_fused_call(x_win, prep):
    B, L, K = x_win.shape
    NP = prep["w_conv"].shape[-1]

    args = [x_win, prep["w_conv"], prep["b_conv"], prep["valid_len"],
            prep["w_hidden"], prep["b_hidden"], prep["w_fc"], prep["b_fc"]]

    # Advisory cost estimate for XLA's scheduler.
    flops = 2 * B * L * K * NP + 2 * B * NP * NP + 2 * B * NP * NP
    bytes_accessed = sum(int(a.size) * a.dtype.itemsize for a in args) + B * NP * 4
    ce = pl.CostEstimate(flops=flops, transcendentals=B * NP,
                         bytes_accessed=bytes_accessed)

    return pl.pallas_call(
        fused_cnn3_kernel,
        out_shape=jax.ShapeDtypeStruct((B, NP), jnp.float32),
        in_specs=[pl.BlockSpec(memory_space=pltpu.MemorySpace.VMEM)] * len(args),
        out_specs=pl.BlockSpec(memory_space=pltpu.MemorySpace.VMEM),
        # Whole-array resident blocks need < 1 MiB at B=4; 16 MiB leaves
        # headroom for larger batches while staying well under v7x's 32 MiB
        # default scoped VMEM.
        compiler_params=pltpu.CompilerParams(vmem_limit_bytes=16 * 1024 * 1024),
        cost_estimate=ce,
    )(*args)


# ----------------------------------------------------------------------------
# Forward (eval mode: dropout is identity).  The embedding gather is done in
# JAX glue; it gathers tap-stacked windows directly so the kernel needs no
# rolls and no misaligned time slices.
# ----------------------------------------------------------------------------
def cnn3_forward(inp, prep, *, filters, class_size):
    B, L = inp.shape
    T = max(filters)
    # Window indices: pos[t, tap] = t + tap (clamped; out-of-range windows are
    # masked inside the kernel so the clamp value is irrelevant).
    pos = jnp.minimum(jnp.arange(L)[:, None] + jnp.arange(T)[None, :], L - 1)  # (L,T)
    idx = inp[:, pos]                                        # (B, L, T)
    xw0 = jnp.take(prep["wv0"], idx, axis=0)                 # (B, L, T, D0)
    xw1 = jnp.take(prep["wv1"], idx, axis=0)                 # (B, L, T, D1)
    x_win = jnp.concatenate([xw0, xw1], axis=-1)             # (B, L, T, D0+D1)
    x_win = x_win.reshape(B, L, T * x_win.shape[-1])         # (B, L, 240)

    out_pad = cnn3_fused_call(x_win, prep)                   # (B, 128)
    return out_pad[:, :class_size]


# ----------------------------------------------------------------------------
# Parameters: PyTorch-equivalent layout, then one-time kernel-layout prep.
# ----------------------------------------------------------------------------
def init_params(key, cfg):
    V = cfg["VOCAB_SIZE"]
    D0, D1 = cfg["WORD_DIM"]
    filters = cfg["FILTERS"]
    filter_num = cfg["FILTER_NUM"]
    C = cfg["CLASS_SIZE"]
    sum_fn = sum(filter_num)

    keys = jax.random.split(key, 8 + 4 * len(filters))
    ki = iter(range(len(keys)))

    def nrm(k, shape, scale=0.1):
        return (scale * jax.random.normal(keys[k], shape)).astype(jnp.float32)

    params = {
        "wv0": nrm(next(ki), (V + 2, D0), 1.0),     # embedding.weight
        "wv1": nrm(next(ki), (V + 2, D1), 1.0),     # embedding_cv.weight
        "conv_w": [], "conv_b": [],
        "conv_cv_w": [], "conv_cv_b": [],
    }
    for i, f in enumerate(filters):
        # PyTorch Conv1d weight (FN, 1, D*F) stored squeezed as (FN, D*F)
        params["conv_w"].append(nrm(next(ki), (filter_num[i], D0 * f)))
        params["conv_b"].append(nrm(next(ki), (filter_num[i],)))
        params["conv_cv_w"].append(nrm(next(ki), (filter_num[i], D1 * f)))
        params["conv_cv_b"].append(nrm(next(ki), (filter_num[i],)))

    params["hidden_w"] = nrm(next(ki), (C, sum_fn))
    params["hidden_b"] = nrm(next(ki), (C,))
    params["hidden_cv_w"] = nrm(next(ki), (C, sum_fn))
    params["hidden_cv_b"] = nrm(next(ki), (C,))
    params["fc_w"] = nrm(next(ki), (C, 2 * C))
    params["fc_b"] = nrm(next(ki), (C,))
    return params


def prepare_params(params, cfg):
    """One-time layout prep: pack all conv/hidden/fc weights into the few
    lane-dense, zero-padded block matrices the fused kernel consumes."""
    filters = cfg["FILTERS"]
    filter_num = cfg["FILTER_NUM"]
    D0, D1 = cfg["WORD_DIM"]
    C = cfg["CLASS_SIZE"]
    L = cfg["MAX_SENT_LEN"]

    Dsum = D0 + D1
    T = max(filters)
    NB = sum(filter_num)          # channels per branch (24)
    NC = 2 * NB                   # total conv channels  (48)
    NP = 128                      # lane-padded width
    assert NC <= NP and 2 * C <= NP

    # --- Big conv weight (T*Dsum, 128):
    #     row   k = tap*Dsum + d   (d < D0 -> branch-0 dim, else branch-1 dim)
    #     col   c: [branch-0 channels | branch-1 channels | zero pad]
    #     Block-diagonal across branches; zero rows for taps >= filter size.
    tap_blocks = []
    for t in range(T):
        b0, b1 = [], []
        for i, f in enumerate(filters):
            fn = filter_num[i]
            if t < f:
                w3 = params["conv_w"][i].reshape(fn, f, D0)      # [n, tap, dim]
                b0.append(w3[:, t, :].T)                          # (D0, fn)
                w3cv = params["conv_cv_w"][i].reshape(fn, f, D1)
                b1.append(w3cv[:, t, :].T)                        # (D1, fn)
            else:
                b0.append(jnp.zeros((D0, fn), jnp.float32))
                b1.append(jnp.zeros((D1, fn), jnp.float32))
        top = jnp.concatenate([jnp.concatenate(b0, axis=1),
                               jnp.zeros((D0, NB), jnp.float32)], axis=1)
        bot = jnp.concatenate([jnp.zeros((D1, NB), jnp.float32),
                               jnp.concatenate(b1, axis=1)], axis=1)
        tap_blocks.append(jnp.concatenate([top, bot], axis=0))    # (Dsum, NC)
    w_conv = jnp.concatenate(tap_blocks, axis=0)                  # (T*Dsum, NC)
    w_conv = jnp.pad(w_conv, ((0, 0), (0, NP - NC)))              # (T*Dsum, 128)

    b_conv = jnp.concatenate(params["conv_b"] + params["conv_cv_b"])  # (NC,)
    b_conv = jnp.pad(b_conv, (0, NP - NC)).reshape(1, NP)

    # valid conv length (t_out = L - f + 1) per channel column.
    vlen = []
    for _ in range(2):
        for i, f in enumerate(filters):
            vlen += [L - f + 1] * filter_num[i]
    vlen += [L] * (NP - NC)       # padded channels: value irrelevant (weights 0)
    valid_len = jnp.asarray(vlen, jnp.int32).reshape(1, NP)

    # --- hidden / hidden_cv packed block-diagonally into one (128, 128).
    w_hidden = jnp.zeros((NP, NP), jnp.float32)
    w_hidden = w_hidden.at[0:NB, 0:C].set(params["hidden_w"].T)
    w_hidden = w_hidden.at[NB:NC, C:2 * C].set(params["hidden_cv_w"].T)
    b_hidden = jnp.zeros((1, NP), jnp.float32)
    b_hidden = b_hidden.at[0, 0:C].set(params["hidden_b"])
    b_hidden = b_hidden.at[0, C:2 * C].set(params["hidden_cv_b"])

    # --- fc over cat(h, hcv), zero-padded to (128, 128).
    w_fc = jnp.zeros((NP, NP), jnp.float32).at[0:2 * C, 0:C].set(params["fc_w"].T)
    b_fc = jnp.zeros((1, NP), jnp.float32).at[0, 0:C].set(params["fc_b"])

    return {"wv0": params["wv0"], "wv1": params["wv1"],
            "w_conv": w_conv, "b_conv": b_conv, "valid_len": valid_len,
            "w_hidden": w_hidden, "b_hidden": b_hidden,
            "w_fc": w_fc, "b_fc": b_fc}


# ----------------------------------------------------------------------------
# Pure-JAX reference (mirrors the PyTorch forward) for self-check
# ----------------------------------------------------------------------------
def cnn3_reference(inp, params, cfg):
    filters = cfg["FILTERS"]

    def branch(xe, conv_ws, conv_bs, hw, hb):
        B, L, D = xe.shape
        feats = []
        for i, f in enumerate(filters):
            t_out = L - f + 1
            win = jnp.stack([xe[:, t:t + t_out, :] for t in range(f)], axis=2)
            win = win.reshape(B, t_out, f * D)
            s = jnp.einsum("btk,nk->btn", win, conv_ws[i]) + conv_bs[i]
            s = jnp.maximum(s, 0.0)
            feats.append(jnp.max(s, axis=1))
        feat = jnp.concatenate(feats, axis=1)
        return jnp.tanh(feat @ hw.T + hb)

    x = jnp.take(params["wv0"], inp, axis=0)
    xcv = jnp.take(params["wv1"], inp, axis=0)
    h = branch(x, params["conv_w"], params["conv_b"],
               params["hidden_w"], params["hidden_b"])
    hcv = branch(xcv, params["conv_cv_w"], params["conv_cv_b"],
                 params["hidden_cv_w"], params["hidden_cv_b"])
    cat = jnp.concatenate([h, hcv], axis=1)
    return cat @ params["fc_w"].T + params["fc_b"]


if __name__ == "__main__":
    cfg = {
        "MODEL": "non-static",      # IN_CHANNEL = 1
        "BATCH_SIZE": 4,
        "MAX_SENT_LEN": 16,
        "VOCAB_SIZE": 50,
        "CLASS_SIZE": 4,
        "FILTERS": [3, 4, 5],
        "FILTER_NUM": [8, 8, 8],
        "DROPOUT_PROB": 0.5,        # eval mode -> identity
        "WORD_DIM": [32, 16],
    }

    key = jax.random.PRNGKey(0)
    k_params, k_inp = jax.random.split(key)
    params = init_params(k_params, cfg)
    prep = prepare_params(params, cfg)   # one-time layout prep, outside forward

    inp = jax.random.randint(
        k_inp, (cfg["BATCH_SIZE"], cfg["MAX_SENT_LEN"]), 0, cfg["VOCAB_SIZE"],
        dtype=jnp.int32,
    )

    fwd = jax.jit(functools.partial(
        cnn3_forward,
        filters=tuple(cfg["FILTERS"]),
        class_size=cfg["CLASS_SIZE"],
    ))

    out = jax.block_until_ready(fwd(inp, prep))
    assert out.shape == (cfg["BATCH_SIZE"], cfg["CLASS_SIZE"]), out.shape
    assert out.dtype == jnp.float32

    ref = jax.block_until_ready(cnn3_reference(inp, params, cfg))
    assert jnp.allclose(out, ref, rtol=2e-4, atol=2e-4), (out, ref)

    print("KERNEL_OK")
</pallas_src>

<mosaic_0001>
module attributes {stable_mosaic.version = 11 : i64} {
  func.func @fused_cnn3_kernel(%arg0: memref<4x16x240xf32, #tpu.memory_space<vmem>>, %arg1: memref<240x128xf32, #tpu.memory_space<vmem>>, %arg2: memref<1x128xf32, #tpu.memory_space<vmem>>, %arg3: memref<1x128xi32, #tpu.memory_space<vmem>>, %arg4: memref<128x128xf32, #tpu.memory_space<vmem>>, %arg5: memref<1x128xf32, #tpu.memory_space<vmem>>, %arg6: memref<128x128xf32, #tpu.memory_space<vmem>>, %arg7: memref<1x128xf32, #tpu.memory_space<vmem>>, %arg8: memref<4x128xf32, #tpu.memory_space<vmem>>) attributes {dimension_semantics = [], scalar_prefetch = 0 : i64, scratch_operands = 0 : i64, tpu.core_type = #tpu.core_type<tc>} {
    %c0 = arith.constant 0 : index
    %c0_0 = arith.constant 0 : index
    %c0_1 = arith.constant 0 : index
    %0 = vector.load %arg0[%c0, %c0_0, %c0_1] : memref<4x16x240xf32, #tpu.memory_space<vmem>>, vector<4x16x240xf32>
    %1 = vector.shape_cast %0 : vector<4x16x240xf32> to vector<64x240xf32>
    %c0_2 = arith.constant 0 : index
    %c0_3 = arith.constant 0 : index
    %2 = vector.load %arg1[%c0_2, %c0_3] : memref<240x128xf32, #tpu.memory_space<vmem>>, vector<240x128xf32>
    %cst = arith.constant dense<0.000000e+00> : vector<64x128xf32>
    %3 = tpu.matmul %1, %2, %cst {dimension_numbers = #tpu.dot_dimension_numbers<[1], [0], [0], [1], [0, 0, 1, 1], [], []>} : vector<64x240xf32>, vector<240x128xf32>, vector<64x128xf32> -> vector<64x128xf32>
    %c0_4 = arith.constant 0 : index
    %c0_5 = arith.constant 0 : index
    %4 = vector.load %arg2[%c0_4, %c0_5] : memref<1x128xf32, #tpu.memory_space<vmem>>, vector<1x128xf32>
    %5 = vector.broadcast %4 : vector<1x128xf32> to vector<64x128xf32>
    %6 = arith.addf %3, %5 : vector<64x128xf32>
    %cst_6 = arith.constant 0.000000e+00 : f32
    %7 = vector.broadcast %cst_6 : f32 to vector<64x128xf32>
    %8 = arith.maximumf %6, %7 : vector<64x128xf32>
    %9 = vector.shape_cast %8 : vector<64x128xf32> to vector<4x16x128xf32>
    %10 = tpu.iota {dimensions = array<i32: 1>} : vector<4x16x128xi32>
    %c0_7 = arith.constant 0 : index
    %c0_8 = arith.constant 0 : index
    %11 = vector.load %arg3[%c0_7, %c0_8] : memref<1x128xi32, #tpu.memory_space<vmem>>, vector<1x128xi32>
    %12 = vector.shape_cast %11 : vector<1x128xi32> to vector<1x1x128xi32>
    %13 = vector.broadcast %12 : vector<1x1x128xi32> to vector<4x16x128xi32>
    %14 = arith.cmpi slt, %10, %13 : vector<4x16x128xi32>
    %cst_9 = arith.constant 0.000000e+00 : f32
    %15 = vector.broadcast %cst_9 : f32 to vector<4x16x128xf32>
    %16 = arith.select %14, %9, %15 : vector<4x16x128xi1>, vector<4x16x128xf32>
    %cst_10 = arith.constant dense<0xFF800000> : vector<4x128xf32>
    %17 = vector.multi_reduction <maximumf>, %16, %cst_10 [1] : vector<4x16x128xf32> to vector<4x128xf32>
    %c0_11 = arith.constant 0 : index
    %c0_12 = arith.constant 0 : index
    %18 = vector.load %arg4[%c0_11, %c0_12] : memref<128x128xf32, #tpu.memory_space<vmem>>, vector<128x128xf32>
    %cst_13 = arith.constant dense<0.000000e+00> : vector<4x128xf32>
    %19 = tpu.matmul %17, %18, %cst_13 {dimension_numbers = #tpu.dot_dimension_numbers<[1], [0], [0], [1], [0, 0, 1, 1], [], []>} : vector<4x128xf32>, vector<128x128xf32>, vector<4x128xf32> -> vector<4x128xf32>
    %c0_14 = arith.constant 0 : index
    %c0_15 = arith.constant 0 : index
    %20 = vector.load %arg5[%c0_14, %c0_15] : memref<1x128xf32, #tpu.memory_space<vmem>>, vector<1x128xf32>
    %21 = vector.broadcast %20 : vector<1x128xf32> to vector<4x128xf32>
    %22 = arith.addf %19, %21 : vector<4x128xf32>
    %23 = math.tanh %22 : vector<4x128xf32>
    %c0_16 = arith.constant 0 : index
    %c0_17 = arith.constant 0 : index
    %24 = vector.load %arg6[%c0_16, %c0_17] : memref<128x128xf32, #tpu.memory_space<vmem>>, vector<128x128xf32>
    %cst_18 = arith.constant dense<0.000000e+00> : vector<4x128xf32>
    %25 = tpu.matmul %23, %24, %cst_18 {dimension_numbers = #tpu.dot_dimension_numbers<[1], [0], [0], [1], [0, 0, 1, 1], [], []>} : vector<4x128xf32>, vector<128x128xf32>, vector<4x128xf32> -> vector<4x128xf32>
    %c0_19 = arith.constant 0 : index
    %c0_20 = arith.constant 0 : index
    %26 = vector.load %arg7[%c0_19, %c0_20] : memref<1x128xf32, #tpu.memory_space<vmem>>, vector<1x128xf32>
    %27 = vector.broadcast %26 : vector<1x128xf32> to vector<4x128xf32>
    %28 = arith.addf %25, %27 : vector<4x128xf32>
    %c0_21 = arith.constant 0 : index
    %c0_22 = arith.constant 0 : index
    %29 = vector.load %arg8[%c0_21, %c0_22] : memref<4x128xf32, #tpu.memory_space<vmem>>, vector<4x128xf32>
    tpu.vector_store %arg8[%c0_21, %c0_22], %28 {strides = array<i32>} : memref<4x128xf32, #tpu.memory_space<vmem>>, vector<4x128xf32>,
    return
  }
}

</mosaic_0001>

<llo_original>
// kernel: cnn3_forward.1
$region0: #{cnn3_forward.1}
  #allocation0 [shape = 'u32[]', space=smem, size = 0x4, offset = 0x4, fixed_abs, tag = 'smem constant byte address 0x4 - core index']
  #allocation1 [shape = 'u32[144,128]{1,0:T(1,128)}', space=vmem, size = 0x12000, scoped, tag = 'internal scratch']
  %s0 = inlined_call_operand.vmem [shape: f32[4,16,240], index: 0, kind: input, shape index: {}]
  %s1 = inlined_call_operand.vmem [shape: f32[240,128], index: 1, kind: input, shape index: {}]
  %s2 = inlined_call_operand.vmem [shape: f32[1,128], index: 2, kind: input, shape index: {}]
  %s3 = inlined_call_operand.vmem [shape: s32[1,128], index: 3, kind: input, shape index: {}]
  %s4 = inlined_call_operand.vmem [shape: f32[128,128], index: 4, kind: input, shape index: {}]
  %s5 = inlined_call_operand.vmem [shape: f32[1,128], index: 5, kind: input, shape index: {}]
  %s6 = inlined_call_operand.vmem [shape: f32[128,128], index: 6, kind: input, shape index: {}]
  %s7 = inlined_call_operand.vmem [shape: f32[1,128], index: 7, kind: input, shape index: {}]
  %s8 = inlined_call_operand.hbm [shape: f32[4,128], index: 8, kind: output, shape index: {}]
  %s9 = sld [smem:[#allocation0]]
  $region42: #{cnn3_forward.1} parent=0
    _
  %s11 = ssub.s32 1, %s9
  %s12 = scalar_select 0, %s11, %s9
  $region1: #{cnn3_forward.1} parent=0
    #allocation2 [shape = 'u8[2048]{0}', space=vmem, size = 0x800, scoped, tag = 'output window, operand 0, single buffered']
    #allocation3 [shape = 's32[1]{0}', space=sflag, size = 0x4, scoped, tag = 'scoped memory for cnn3_forward.1']
    %13 = vsyncpa [#allocation3], 0
    // Predicated region
    $region2: #{cnn3_forward.1} parent=1 // pred_check
      _
    $region3: #{cnn3_forward.1} parent=1 // pred_check_branch
      %15 = sbr.rel (0) target = $region5
    $region4: #{cnn3_forward.1} parent=1 // pred_region
      _
    $region5: #{cnn3_forward.1} parent=1 // pred_fallthru
      _
    // Predicated region
    $region6: #{cnn3_forward.1} parent=1 // pred_check
      _
    $region7: #{cnn3_forward.1} parent=1 // pred_check_branch
      %17 = sbr.rel (0) target = $region9
    $region8: #{cnn3_forward.1} parent=1 // pred_region
      _
    $region9: #{cnn3_forward.1} parent=1 // pred_fallthru
      _
    // Predicated region
    $region10: #{cnn3_forward.1} parent=1 // pred_check
      _
    $region11: #{cnn3_forward.1} parent=1 // pred_check_branch
      %19 = sbr.rel (0) target = $region13
    $region12: #{cnn3_forward.1} parent=1 // pred_region
      _
    $region13: #{cnn3_forward.1} parent=1 // pred_fallthru
      _
    // Predicated region
    $region14: #{cnn3_forward.1} parent=1 // pred_check
      _
    $region15: #{cnn3_forward.1} parent=1 // pred_check_branch
      %21 = sbr.rel (0) target = $region17
    $region16: #{cnn3_forward.1} parent=1 // pred_region
      _
    $region17: #{cnn3_forward.1} parent=1 // pred_fallthru
      _
    // Predicated region
    $region18: #{cnn3_forward.1} parent=1 // pred_check
      _
    $region19: #{cnn3_forward.1} parent=1 // pred_check_branch
      %23 = sbr.rel (0) target = $region21
    $region20: #{cnn3_forward.1} parent=1 // pred_region
      _
    $region21: #{cnn3_forward.1} parent=1 // pred_fallthru
      _
    // Predicated region
    $region22: #{cnn3_forward.1} parent=1 // pred_check
      _
    $region23: #{cnn3_forward.1} parent=1 // pred_check_branch
      %25 = sbr.rel (0) target = $region25
    $region24: #{cnn3_forward.1} parent=1 // pred_region
      _
    $region25: #{cnn3_forward.1} parent=1 // pred_fallthru
      _
    // Predicated region
    $region26: #{cnn3_forward.1} parent=1 // pred_check
      _
    $region27: #{cnn3_forward.1} parent=1 // pred_check_branch
      %27 = sbr.rel (0) target = $region29
    $region28: #{cnn3_forward.1} parent=1 // pred_region
      _
    $region29: #{cnn3_forward.1} parent=1 // pred_fallthru
      _
    // Predicated region
    $region30: #{cnn3_forward.1} parent=1 // pred_check
      _
    $region31: #{cnn3_forward.1} parent=1 // pred_check_branch
      %29 = sbr.rel (0) target = $region33
    $region32: #{cnn3_forward.1} parent=1 // pred_region
      _
    $region33: #{cnn3_forward.1} parent=1 // pred_fallthru
      _
    %v30 = vld [vmem:[%s0] sm:$0xff]
    %v31 = vld [vmem:[%s0 + $0x8] sm:$0xff]
    %v32 = vld [vmem:[%s0 + $0x10] sm:$0xff]
    %v33 = vld [vmem:[%s0 + $0x18] sm:$0xff]
    %v34 = vld [vmem:[%s0 + $0x20] sm:$0xff]
    %v35 = vld [vmem:[%s0 + $0x28] sm:$0xff]
    %v36 = vld [vmem:[%s0 + $0x30] sm:$0xff]
    %v37 = vld [vmem:[%s0 + $0x38] sm:$0xff]
    %v38 = vld [vmem:[%s0 + $0x40] sm:$0xff]
    %v39 = vld [vmem:[%s0 + $0x48] sm:$0xff]
    %v40 = vld [vmem:[%s0 + $0x50] sm:$0xff]
    %v41 = vld [vmem:[%s0 + $0x58] sm:$0xff]
    %v42 = vld [vmem:[%s0 + $0x60] sm:$0xff]
    %v43 = vld [vmem:[%s0 + $0x68] sm:$0xff]
    %v44 = vld [vmem:[%s0 + $0x70] sm:$0xff]
    %v45 = vld [vmem:[%s0 + $0x78] sm:$0xff]
    %v46 = vld [vmem:[%s1] sm:$0xff]
    %v47 = vld [vmem:[%s1 + $0x8] sm:$0xff]
    %v48 = vld [vmem:[%s1 + $0x10] sm:$0xff]
    %v49 = vld [vmem:[%s1 + $0x18] sm:$0xff]
    %v50 = vld [vmem:[%s1 + $0x20] sm:$0xff]
    %v51 = vld [vmem:[%s1 + $0x28] sm:$0xff]
    %v52 = vld [vmem:[%s1 + $0x30] sm:$0xff]
    %v53 = vld [vmem:[%s1 + $0x38] sm:$0xff]
    %v54 = vld [vmem:[%s1 + $0x40] sm:$0xff]
    %v55 = vld [vmem:[%s1 + $0x48] sm:$0xff]
    %v56 = vld [vmem:[%s1 + $0x50] sm:$0xff]
    %v57 = vld [vmem:[%s1 + $0x58] sm:$0xff]
    %v58 = vld [vmem:[%s1 + $0x60] sm:$0xff]
    %v59 = vld [vmem:[%s1 + $0x68] sm:$0xff]
    %v60 = vld [vmem:[%s1 + $0x70] sm:$0xff]
    %v61 = vld [vmem:[%s1 + $0x78] sm:$0xff]
    %v62 = vld [vmem:[%s1 + $0x80] sm:$0xff]
    %v63 = vld [vmem:[%s1 + $0x88] sm:$0xff]
    %v64 = vld [vmem:[%s1 + $0x90] sm:$0xff]
    %v65 = vld [vmem:[%s1 + $0x98] sm:$0xff]
    %v66 = vld [vmem:[%s1 + $0xa0] sm:$0xff]
    %v67 = vld [vmem:[%s1 + $0xa8] sm:$0xff]
    %v68 = vld [vmem:[%s1 + $0xb0] sm:$0xff]
    %v69 = vld [vmem:[%s1 + $0xb8] sm:$0xff]
    %v70 = vld [vmem:[%s1 + $0xc0] sm:$0xff]
    %v71 = vld [vmem:[%s1 + $0xc8] sm:$0xff]
    %v72 = vld [vmem:[%s1 + $0xd0] sm:$0xff]
    %v73 = vld [vmem:[%s1 + $0xd8] sm:$0xff]
    %v74 = vld [vmem:[%s1 + $0xe0] sm:$0xff]
    %v75 = vld [vmem:[%s1 + $0xe8] sm:$0xff]
    %v76 = vld [vmem:[%s2] sm:$0x1]
    %v78 = vlaneseq
    %v79 = vshrl.u32 %v78, 7
    %v80 = vsub.s32 0, %v79
    %v81 = vrot.slane %v76, %v80
    %vm83 = vcmask 916480
    %v85 = vsel %vm83, %v31, 0
    %v88 = vsel %vm83, %v33, 0
    %v91 = vsel %vm83, %v35, 0
    %v94 = vsel %vm83, %v37, 0
    %v97 = vsel %vm83, %v39, 0
    %v100 = vsel %vm83, %v41, 0
    %v103 = vsel %vm83, %v43, 0
    %v106 = vsel %vm83, %v45, 0
    %108 = vmatprep.subr.mxu0 0.0
    %109 = vmatpush1.msra.mxu0 %v46
    %110 = vmatprep.subr.mxu0 0.0
    %111 = vmatpush1.msra.mxu0 %v47
    %112 = vmatprep.subr.mxu0 0.0
    %113 = vmatpush1.msra.mxu0 %v48
    %114 = vmatprep.subr.mxu0 0.0
    %115 = vmatpush1.msra.mxu0 %v49
    %116 = vmatprep.subr.mxu0 0.0
    %117 = vmatpush1.msra.mxu0 %v50
    %118 = vmatprep.subr.mxu0 0.0
    %119 = vmatpush1.msra.mxu0 %v51
    %120 = vmatprep.subr.mxu0 0.0
    %121 = vmatpush1.msra.mxu0 %v52
    %122 = vmatprep.subr.mxu0 0.0
    %123 = vmatpush1.msra.mxu0 %v53
    %124 = vmatprep.subr.mxu0 0.0
    %125 = vmatpush1.msra.mxu0 %v54
    %126 = vmatprep.subr.mxu0 0.0
    %127 = vmatpush1.msra.mxu0 %v55
    %128 = vmatprep.subr.mxu0 0.0
    %129 = vmatpush1.msra.mxu0 %v56
    %130 = vmatprep.subr.mxu0 0.0
    %131 = vmatpush1.msra.mxu0 %v57
    %132 = vmatprep.subr.mxu0 0.0
    %133 = vmatpush1.msra.mxu0 %v58
    %134 = vmatprep.subr.mxu0 0.0
    %135 = vmatpush1.msra.mxu0 %v59
    %136 = vmatprep.subr.mxu0 0.0
    %137 = vmatpush1.msra.mxu0 %v60
    %138 = vmatprep.subr.mxu0 0.0
    %139 = vmatpush1.msra.mxu0 %v61
    %140 = vmatprep.subr.mxu0 0.0
    %141 = vmatpush1.msra.mxu0 %v62
    %142 = vmatprep.subr.mxu0 0.0
    %143 = vmatpush1.msra.mxu0 %v63
    %144 = vmatprep.subr.mxu0 0.0
    %145 = vmatpush1.msra.mxu0 %v64
    %146 = vmatprep.subr.mxu0 0.0
    %147 = vmatpush1.msra.mxu0 %v65
    %148 = vmatprep.subr.mxu0 0.0
    %149 = vmatpush1.msra.mxu0 %v66
    %150 = vmatprep.subr.mxu0 0.0
    %151 = vmatpush1.msra.mxu0 %v67
    %152 = vmatprep.subr.mxu0 0.0
    %153 = vmatpush1.msra.mxu0 %v68
    %154 = vmatprep.subr.mxu0 0.0
    %155 = vmatpush1.msra.mxu0 %v69
    %156 = vmatprep.subr.mxu0 0.0
    %157 = vmatpush1.msra.mxu0 %v70
    %158 = vmatprep.subr.mxu0 0.0
    %159 = vmatpush1.msra.mxu0 %v71
    %160 = vmatprep.subr.mxu0 0.0
    %161 = vmatpush1.msra.mxu0 %v72
    %162 = vmatprep.subr.mxu0 0.0
    %163 = vmatpush1.msra.mxu0 %v73
    %164 = vmatprep.subr.mxu0 0.0
    %165 = vmatpush1.msra.mxu0 %v74
    %166 = vmatprep.subr.mxu0 0.0
    %167 = vmatpush1.msra.mxu0 %v75
    %168 = vmatprep.subr.mxu0 0.0
    %169 = vmatpush1.msra.mxu0 0.0
    %170 = vmatprep.subr.mxu0 0.0
    %171 = vmatpush1.msra.mxu0 0.0
    %172 = vmatprep.mubr.f32.mxu0 %v85
    %173 = vmatmul.mubr.f32.gmra.mrb[0].mxu0 %v30
    %v174 = vpop.f32.mrb[0].mxu0
    %v175 = vadd.f32 %v81, %v174
    %v176 = vpop.f32.mrb[0].mxu0
    %177 = vmatprep.mubr.f32.mxu0 %v88
    %178 = vmatmul.mubr.f32.gmra.mrb[0].mxu0 %v32
    %v179 = vpop.f32.mrb[0].mxu0
    %v180 = vadd.f32 %v81, %v179
    %v181 = vpop.f32.mrb[0].mxu0
    %182 = vmatprep.mubr.f32.mxu0 %v91
    %183 = vmatmul.mubr.f32.gmra.mrb[0].mxu0 %v34
    %v184 = vpop.f32.mrb[0].mxu0
    %v185 = vadd.f32 %v81, %v184
    %v186 = vpop.f32.mrb[0].mxu0
    %187 = vmatprep.mubr.f32.mxu0 %v94
    %188 = vmatmul.mubr.f32.gmra.mrb[0].mxu0 %v36
    %v189 = vpop.f32.mrb[0].mxu0
    %v190 = vadd.f32 %v81, %v189
    %v191 = vpop.f32.mrb[0].mxu0
    %192 = vmatprep.mubr.f32.mxu0 %v97
    %193 = vmatmul.mubr.f32.gmra.mrb[0].mxu0 %v38
    %v194 = vpop.f32.mrb[0].mxu0
    %v195 = vadd.f32 %v81, %v194
    %v196 = vpop.f32.mrb[0].mxu0
    %197 = vmatprep.mubr.f32.mxu0 %v100
    %198 = vmatmul.mubr.f32.gmra.mrb[0].mxu0 %v40
    %v199 = vpop.f32.mrb[0].mxu0
    %v200 = vadd.f32 %v81, %v199
    %v201 = vpop.f32.mrb[0].mxu0
    %202 = vmatprep.mubr.f32.mxu0 %v103
    %203 = vmatmul.mubr.f32.gmra.mrb[0].mxu0 %v42
    %v204 = vpop.f32.mrb[0].mxu0
    %v205 = vadd.f32 %v81, %v204
    %v206 = vpop.f32.mrb[0].mxu0
    %207 = vmatprep.mubr.f32.mxu0 %v106
    %208 = vmatmul.mubr.f32.gmra.mrb[0].mxu0 %v44
    %v209 = vpop.f32.mrb[0].mxu0
    %v210 = vadd.f32 %v81, %v209
    %v211 = vpop.f32.mrb[0].mxu0
    %212 = vdwg.mxu0
    %v213 = vmax.f32 %v175, 0.0
    %v214 = vmax.f32 %v180, 0.0
    %v215 = vmax.f32 %v185, 0.0
    %v216 = vmax.f32 %v190, 0.0
    %v217 = vmax.f32 %v195, 0.0
    %v218 = vmax.f32 %v200, 0.0
    %v219 = vmax.f32 %v205, 0.0
    %v220 = vmax.f32 %v210, 0.0
    %v221 = vlaneseq
    %v222 = vshrl.u32 %v221, 7
    %v223 = vadd.s32 %v222, 8
    %v224 = vld [vmem:[%s3] sm:$0x1]
    %v225 = vlaneseq
    %v226 = vshrl.u32 %v225, 7
    %v227 = vsub.s32 0, %v226
    %v228 = vrot.slane %v224, %v227
    %vm229 = vcmp.lt.s32.totalorder %v222, %v228
    %vm230 = vcmp.lt.s32.totalorder %v223, %v228
    %v231 = vsel %vm229, %v213, 0.0
    %v232 = vsel %vm230, %v214, 0.0
    %v233 = vsel %vm229, %v215, 0.0
    %v234 = vsel %vm230, %v216, 0.0
    %v235 = vsel %vm229, %v217, 0.0
    %v236 = vsel %vm230, %v218, 0.0
    %v237 = vsel %vm229, %v219, 0.0
    %v238 = vsel %vm230, %v220, 0.0
    %v239 = vmax.f32 %v231, %v232
    %v240 = vrot.slane %v239, 4
    %v241 = vmax.f32 %v239, %v240
    %v242 = vrot.slane %v241, 2
    %v243 = vmax.f32 %v241, %v242
    %v244 = vrot.slane %v243, 1
    %v245 = vmax.f32 %v243, %v244
    %v246 = vmax.f32 %v233, %v234
    %v247 = vrot.slane %v246, 4
    %v248 = vmax.f32 %v246, %v247
    %v249 = vrot.slane %v248, 2
    %v250 = vmax.f32 %v248, %v249
    %v251 = vrot.slane %v250, 1
    %v252 = vmax.f32 %v250, %v251
    %v253 = vmax.f32 %v235, %v236
    %v254 = vrot.slane %v253, 4
    %v255 = vmax.f32 %v253, %v254
    %v256 = vrot.slane %v255, 2
    %v257 = vmax.f32 %v255, %v256
    %v258 = vrot.slane %v257, 1
    %v259 = vmax.f32 %v257, %v258
    %v260 = vmax.f32 %v237, %v238
    %v261 = vrot.slane %v260, 4
    %v262 = vmax.f32 %v260, %v261
    %v263 = vrot.slane %v262, 2
    %v264 = vmax.f32 %v262, %v263
    %v265 = vrot.slane %v264, 1
    %v266 = vmax.f32 %v264, %v265
    %v267 = vld [vmem:[%s4] sm:$0xff]
    %v268 = vld [vmem:[%s4 + $0x8] sm:$0xff]
    %v269 = vld [vmem:[%s4 + $0x10] sm:$0xff]
    %v270 = vld [vmem:[%s4 + $0x18] sm:$0xff]
    %v271 = vld [vmem:[%s4 + $0x20] sm:$0xff]
    %v272 = vld [vmem:[%s4 + $0x28] sm:$0xff]
    %v273 = vld [vmem:[%s4 + $0x30] sm:$0xff]
    %v274 = vld [vmem:[%s4 + $0x38] sm:$0xff]
    %v275 = vld [vmem:[%s4 + $0x40] sm:$0xff]
    %v276 = vld [vmem:[%s4 + $0x48] sm:$0xff]
    %v277 = vld [vmem:[%s4 + $0x50] sm:$0xff]
    %v278 = vld [vmem:[%s4 + $0x58] sm:$0xff]
    %v279 = vld [vmem:[%s4 + $0x60] sm:$0xff]
    %v280 = vld [vmem:[%s4 + $0x68] sm:$0xff]
    %v281 = vld [vmem:[%s4 + $0x70] sm:$0xff]
    %v282 = vld [vmem:[%s4 + $0x78] sm:$0xff]
    %v283 = vld [vmem:[%s5] sm:$0x1]
    %v285 = vlaneseq
    %v286 = vshrl.u32 %v285, 7
    %v287 = vsub.s32 0, %v286
    %v288 = vrot.slane %v283, %v287
    %vm294 = vcmask 1041409
    %v295 = vsel %vm294, %v252, %v245
    %vm296 = vcmask 1042434
    %v297 = vsel %vm296, %v259, %v295
    %vm298 = vcmask 1043459
    %v299 = vsel %vm298, %v266, %v297
    %301 = vmatprep.subr.mxu0 0.0
    %302 = vmatpush1.msra.mxu0 %v267
    %303 = vmatprep.subr.mxu0 0.0
    %304 = vmatpush1.msra.mxu0 %v268
    %305 = vmatprep.subr.mxu0 0.0
    %306 = vmatpush1.msra.mxu0 %v269
    %307 = vmatprep.subr.mxu0 0.0
    %308 = vmatpush1.msra.mxu0 %v270
    %309 = vmatprep.subr.mxu0 0.0
    %310 = vmatpush1.msra.mxu0 %v271
    %311 = vmatprep.subr.mxu0 0.0
    %312 = vmatpush1.msra.mxu0 %v272
    %313 = vmatprep.subr.mxu0 0.0
    %314 = vmatpush1.msra.mxu0 %v273
    %315 = vmatprep.subr.mxu0 0.0
    %316 = vmatpush1.msra.mxu0 %v274
    %317 = vmatprep.subr.mxu0 0.0
    %318 = vmatpush1.msra.mxu0 %v275
    %319 = vmatprep.subr.mxu0 0.0
    %320 = vmatpush1.msra.mxu0 %v276
    %321 = vmatprep.subr.mxu0 0.0
    %322 = vmatpush1.msra.mxu0 %v277
    %323 = vmatprep.subr.mxu0 0.0
    %324 = vmatpush1.msra.mxu0 %v278
    %325 = vmatprep.subr.mxu0 0.0
    %326 = vmatpush1.msra.mxu0 %v279
    %327 = vmatprep.subr.mxu0 0.0
    %328 = vmatpush1.msra.mxu0 %v280
    %329 = vmatprep.subr.mxu0 0.0
    %330 = vmatpush1.msra.mxu0 %v281
    %331 = vmatprep.subr.mxu0 0.0
    %332 = vmatpush1.msra.mxu0 %v282
    %333 = vmatprep.subr.mxu0 0.0
    %334 = vmatpush1.msra.mxu0 0.0
    %335 = vmatprep.subr.mxu0 0.0
    %336 = vmatpush1.msra.mxu0 0.0
    %337 = vmatprep.subr.mxu0 0.0
    %338 = vmatpush1.msra.mxu0 0.0
    %339 = vmatprep.subr.mxu0 0.0
    %340 = vmatpush1.msra.mxu0 0.0
    %341 = vmatprep.subr.mxu0 0.0
    %342 = vmatpush1.msra.mxu0 0.0
    %343 = vmatprep.subr.mxu0 0.0
    %344 = vmatpush1.msra.mxu0 0.0
    %345 = vmatprep.subr.mxu0 0.0
    %346 = vmatpush1.msra.mxu0 0.0
    %347 = vmatprep.subr.mxu0 0.0
    %348 = vmatpush1.msra.mxu0 0.0
    %349 = vmatprep.subr.mxu0 0.0
    %350 = vmatpush1.msra.mxu0 0.0
    %351 = vmatprep.subr.mxu0 0.0
    %352 = vmatpush1.msra.mxu0 0.0
    %353 = vmatprep.subr.mxu0 0.0
    %354 = vmatpush1.msra.mxu0 0.0
    %355 = vmatprep.subr.mxu0 0.0
    %356 = vmatpush1.msra.mxu0 0.0
    %357 = vmatprep.subr.mxu0 0.0
    %358 = vmatpush1.msra.mxu0 0.0
    %359 = vmatprep.subr.mxu0 0.0
    %360 = vmatpush1.msra.mxu0 0.0
    %361 = vmatprep.subr.mxu0 0.0
    %362 = vmatpush1.msra.mxu0 0.0
    %363 = vmatprep.subr.mxu0 0.0
    %364 = vmatpush1.msra.mxu0 0.0
    %365 = vmatprep.mubr.f32.mxu0 0.0
    %366 = vmatmul.mubr.f32.gmra.mrb[0].mxu0 %v299
    %v367 = vpop.f32.mrb[0].mxu0
    %v368 = vadd.f32 %v288, %v367
    %v369 = vpop.f32.mrb[0].mxu0
    %370 = vdwg.mxu0
    %v371 = vtanh.pop %v368
    %v372 = vld [vmem:[%s6] sm:$0xff]
    %v373 = vld [vmem:[%s6 + $0x8] sm:$0xff]
    %v374 = vld [vmem:[%s6 + $0x10] sm:$0xff]
    %v375 = vld [vmem:[%s6 + $0x18] sm:$0xff]
    %v376 = vld [vmem:[%s6 + $0x20] sm:$0xff]
    %v377 = vld [vmem:[%s6 + $0x28] sm:$0xff]
    %v378 = vld [vmem:[%s6 + $0x30] sm:$0xff]
    %v379 = vld [vmem:[%s6 + $0x38] sm:$0xff]
    %v380 = vld [vmem:[%s6 + $0x40] sm:$0xff]
    %v381 = vld [vmem:[%s6 + $0x48] sm:$0xff]
    %v382 = vld [vmem:[%s6 + $0x50] sm:$0xff]
    %v383 = vld [vmem:[%s6 + $0x58] sm:$0xff]
    %v384 = vld [vmem:[%s6 + $0x60] sm:$0xff]
    %v385 = vld [vmem:[%s6 + $0x68] sm:$0xff]
    %v386 = vld [vmem:[%s6 + $0x70] sm:$0xff]
    %v387 = vld [vmem:[%s6 + $0x78] sm:$0xff]
    %v388 = vld [vmem:[%s7] sm:$0x1]
    %v390 = vlaneseq
    %v391 = vshrl.u32 %v390, 7
    %v392 = vsub.s32 0, %v391
    %v393 = vrot.slane %v388, %v392
    %395 = vmatprep.subr.mxu0 0.0
    %396 = vmatpush1.msra.mxu0 %v372
    %397 = vmatprep.subr.mxu0 0.0
    %398 = vmatpush1.msra.mxu0 %v373
    %399 = vmatprep.subr.mxu0 0.0
    %400 = vmatpush1.msra.mxu0 %v374
    %401 = vmatprep.subr.mxu0 0.0
    %402 = vmatpush1.msra.mxu0 %v375
    %403 = vmatprep.subr.mxu0 0.0
    %404 = vmatpush1.msra.mxu0 %v376
    %405 = vmatprep.subr.mxu0 0.0
    %406 = vmatpush1.msra.mxu0 %v377
    %407 = vmatprep.subr.mxu0 0.0
    %408 = vmatpush1.msra.mxu0 %v378
    %409 = vmatprep.subr.mxu0 0.0
    %410 = vmatpush1.msra.mxu0 %v379
    %411 = vmatprep.subr.mxu0 0.0
    %412 = vmatpush1.msra.mxu0 %v380
    %413 = vmatprep.subr.mxu0 0.0
    %414 = vmatpush1.msra.mxu0 %v381
    %415 = vmatprep.subr.mxu0 0.0
    %416 = vmatpush1.msra.mxu0 %v382
    %417 = vmatprep.subr.mxu0 0.0
    %418 = vmatpush1.msra.mxu0 %v383
    %419 = vmatprep.subr.mxu0 0.0
    %420 = vmatpush1.msra.mxu0 %v384
    %421 = vmatprep.subr.mxu0 0.0
    %422 = vmatpush1.msra.mxu0 %v385
    %423 = vmatprep.subr.mxu0 0.0
    %424 = vmatpush1.msra.mxu0 %v386
    %425 = vmatprep.subr.mxu0 0.0
    %426 = vmatpush1.msra.mxu0 %v387
    %427 = vmatprep.subr.mxu0 0.0
    %428 = vmatpush1.msra.mxu0 0.0
    %429 = vmatprep.subr.mxu0 0.0
    %430 = vmatpush1.msra.mxu0 0.0
    %431 = vmatprep.subr.mxu0 0.0
    %432 = vmatpush1.msra.mxu0 0.0
    %433 = vmatprep.subr.mxu0 0.0
    %434 = vmatpush1.msra.mxu0 0.0
    %435 = vmatprep.subr.mxu0 0.0
    %436 = vmatpush1.msra.mxu0 0.0
    %437 = vmatprep.subr.mxu0 0.0
    %438 = vmatpush1.msra.mxu0 0.0
    %439 = vmatprep.subr.mxu0 0.0
    %440 = vmatpush1.msra.mxu0 0.0
    %441 = vmatprep.subr.mxu0 0.0
    %442 = vmatpush1.msra.mxu0 0.0
    %443 = vmatprep.subr.mxu0 0.0
    %444 = vmatpush1.msra.mxu0 0.0
    %445 = vmatprep.subr.mxu0 0.0
    %446 = vmatpush1.msra.mxu0 0.0
    %447 = vmatprep.subr.mxu0 0.0
    %448 = vmatpush1.msra.mxu0 0.0
    %449 = vmatprep.subr.mxu0 0.0
    %450 = vmatpush1.msra.mxu0 0.0
    %451 = vmatprep.subr.mxu0 0.0
    %452 = vmatpush1.msra.mxu0 0.0
    %453 = vmatprep.subr.mxu0 0.0
    %454 = vmatpush1.msra.mxu0 0.0
    %455 = vmatprep.subr.mxu0 0.0
    %456 = vmatpush1.msra.mxu0 0.0
    %457 = vmatprep.subr.mxu0 0.0
    %458 = vmatpush1.msra.mxu0 0.0
    %459 = vmatprep.mubr.f32.mxu0 0.0
    %460 = vmatmul.mubr.f32.gmra.mrb[0].mxu0 %v371
    %v461 = vpop.f32.mrb[0].mxu0
    %v462 = vadd.f32 %v393, %v461
    %v463 = vpop.f32.mrb[0].mxu0
    %464 = vdwg.mxu0
    %465 = vst [vmem:[#allocation2] sm:$0xf] %v462
    // Predicated region
    $region34: #{cnn3_forward.1} parent=1 // pred_check
      _
    $region35: #{cnn3_forward.1} parent=1 // pred_check_branch
      %467 = sbr.rel (0) target = $region37
    $region36: #{cnn3_forward.1} parent=1 // pred_region
      %s469 = ssub.s32 64, 64
      %470 = vsyncadd [#allocation3], %s469
      %s472 = sshll.u32 [#allocation2], 4
      %s473 = int_to_ptr.vmem [resolvable:$true] %s472
      %475 = dma.vmem_to_hbm [thread:$0]  %s473, 64, %s8, [#allocation3]
    $region37: #{cnn3_forward.1} parent=1 // pred_fallthru
      _
    // Predicated region
    $region38: #{cnn3_forward.1} parent=1 // pred_check
      _
    $region39: #{cnn3_forward.1} parent=1 // pred_check_branch
      %477 = sbr.rel (0) target = $region41
    $region40: #{cnn3_forward.1} parent=1 // pred_region
      %478 = dma.done [#allocation3], 64
    $region41: #{cnn3_forward.1} parent=1 // pred_fallthru
      _
    %479 = vsyncpa [#allocation3], 1

</llo_original>
